<compile_context>
chip_gen: v5e
topology: v5e:2x2
jax: 0.10.0
libtpu: 0.0.40
codegen_flags: <defaults>
</compile_context>

<pallas_src>
import functools

import jax
import jax.numpy as jnp
from jax.experimental import pallas as pl
from jax.experimental.pallas import tpu as pltpu


def _round_up(x: int, m: int) -> int:
    return (x + m - 1) // m * m


def _matmul_kernel(x_ref, y_ref, o_ref, acc_ref):
    # K-axis accumulation pattern: zero on first K step, accumulate in f32,
    # cast + store on the last K step.
    @pl.when(pl.program_id(2) == 0)
    def _():
        acc_ref[...] = jnp.zeros_like(acc_ref)

    acc_ref[...] += jnp.dot(
        x_ref[...], y_ref[...], preferred_element_type=jnp.float32
    )

    @pl.when(pl.program_id(2) == pl.num_programs(2) - 1)
    def _():
        o_ref[...] = acc_ref[...].astype(o_ref.dtype)


def _pick_tiles(M: int, K: int, N: int):
    # tm: sublane dim -> multiple of 8; tn/tk: lane dims -> multiples of 128.
    tm = 256 if M >= 256 else _round_up(max(M, 8), 8)
    tn = 256 if N >= 256 else 128
    tk = 512 if K >= 512 else _round_up(max(K, 128), 128)
    return tm, tn, tk


@functools.partial(jax.jit, static_argnames=())
def matmul(x: jax.Array, y: jax.Array) -> jax.Array:
    M, K = x.shape
    K2, N = y.shape
    assert K == K2, "inner dimensions must match"

    out_dtype = jnp.result_type(x.dtype, y.dtype)
    # v7x MXU has no integer path; keep operands in float for portability.
    if jnp.issubdtype(out_dtype, jnp.integer):
        out_dtype = jnp.float32
        x = x.astype(jnp.float32)
        y = y.astype(jnp.float32)

    tm, tn, tk = _pick_tiles(M, K, N)
    Mp, Kp, Np = _round_up(M, tm), _round_up(K, tk), _round_up(N, tn)

    # Zero-pad to tile multiples (lane-dense output; zero K-pad is exact).
    if (Mp, Kp) != (M, K):
        x = jnp.pad(x, ((0, Mp - M), (0, Kp - K)))
    if (Kp, Np) != (K, N):
        y = jnp.pad(y, ((0, Kp - K), (0, Np - N)))

    grid = (Mp // tm, Np // tn, Kp // tk)

    out = pl.pallas_call(
        _matmul_kernel,
        out_shape=jax.ShapeDtypeStruct((Mp, Np), out_dtype),
        grid_spec=pltpu.PrefetchScalarGridSpec(
            num_scalar_prefetch=0,
            grid=grid,
            in_specs=[
                pl.BlockSpec((tm, tk), lambda i, j, k: (i, k)),
                pl.BlockSpec((tk, tn), lambda i, j, k: (k, j)),
            ],
            out_specs=pl.BlockSpec((tm, tn), lambda i, j, k: (i, j)),
            scratch_shapes=[pltpu.VMEM((tm, tn), jnp.float32)],
        ),
        compiler_params=pltpu.CompilerParams(
            dimension_semantics=("parallel", "parallel", "arbitrary"),
        ),
    )(x, y)

    if (Mp, Np) != (M, N):
        out = out[:M, :N]
    return out


if __name__ == "__main__":
    key = jax.random.PRNGKey(0)
    kx, ky = jax.random.split(key)
    # Shapes from MatmulModule.input_shapes(): (32, 32) @ (32, 32)
    x = jax.random.normal(kx, (32, 32), dtype=jnp.float32)
    y = jax.random.normal(ky, (32, 32), dtype=jnp.float32)

    out = matmul(x, y)
    out = jax.block_until_ready(out)

    # Correctness check against plain JAX reference.
    ref = x @ y
    assert out.shape == ref.shape, f"shape mismatch {out.shape} vs {ref.shape}"
    assert jnp.allclose(out, ref, atol=1e-4, rtol=1e-4), "mismatch vs reference"

    # Also exercise a multi-tile path to validate the K-axis accumulation.
    kx2, ky2 = jax.random.split(ky)
    xa = jax.random.normal(kx2, (384, 640), dtype=jnp.float32)
    yb = jax.random.normal(ky2, (640, 512), dtype=jnp.float32)
    out2 = jax.block_until_ready(matmul(xa, yb))
    ref2 = xa @ yb
    assert jnp.allclose(out2, ref2, atol=1e-3, rtol=1e-3), "tiled mismatch vs reference"

    print("KERNEL_OK")
</pallas_src>

<mosaic_0001>
module attributes {stable_mosaic.version = 11 : i64} {
  func.func @_matmul_kernel(%arg0: i32, %arg1: i32, %arg2: i32, %arg3: memref<32x128xf32, #tpu.memory_space<vmem>>, %arg4: memref<128x128xf32, #tpu.memory_space<vmem>>, %arg5: memref<32x128xf32, #tpu.memory_space<vmem>>, %arg6: memref<32x128xf32, #tpu.memory_space<vmem>>) attributes {dimension_semantics = [#tpu.dimension_semantics<parallel>, #tpu.dimension_semantics<parallel>, #tpu.dimension_semantics<arbitrary>], iteration_bounds = array<i64: 1, 1, 1>, scalar_prefetch = 0 : i64, scratch_operands = 1 : i64, tpu.core_type = #tpu.core_type<tc>, window_params = [{transform_indices = @transform_0, window_bounds = array<i64: 32, 128>}, {transform_indices = @transform_1, window_bounds = array<i64: 128, 128>}, {transform_indices = @transform_2, window_bounds = array<i64: 32, 128>}]} {
    %c0_i32 = arith.constant 0 : i32
    %0 = arith.cmpi eq, %arg2, %c0_i32 : i32
    %1 = arith.extui %0 : i1 to i32
    %c0_i32_0 = arith.constant 0 : i32
    %2 = arith.cmpi ne, %1, %c0_i32_0 : i32
    scf.if %2 {
      %cst_10 = arith.constant 0.000000e+00 : f32
      %12 = vector.broadcast %cst_10 : f32 to vector<32x128xf32>
      %c0_11 = arith.constant 0 : index
      %c0_12 = arith.constant 0 : index
      %13 = vector.load %arg6[%c0_11, %c0_12] : memref<32x128xf32, #tpu.memory_space<vmem>>, vector<32x128xf32>
      tpu.vector_store %arg6[%c0_11, %c0_12], %12 {strides = array<i32>} : memref<32x128xf32, #tpu.memory_space<vmem>>, vector<32x128xf32>,
    } else {
    }
    %c0 = arith.constant 0 : index
    %c0_1 = arith.constant 0 : index
    %3 = vector.load %arg6[%c0, %c0_1] : memref<32x128xf32, #tpu.memory_space<vmem>>, vector<32x128xf32>
    %c0_2 = arith.constant 0 : index
    %c0_3 = arith.constant 0 : index
    %4 = vector.load %arg3[%c0_2, %c0_3] : memref<32x128xf32, #tpu.memory_space<vmem>>, vector<32x128xf32>
    %c0_4 = arith.constant 0 : index
    %c0_5 = arith.constant 0 : index
    %5 = vector.load %arg4[%c0_4, %c0_5] : memref<128x128xf32, #tpu.memory_space<vmem>>, vector<128x128xf32>
    %cst = arith.constant dense<0.000000e+00> : vector<32x128xf32>
    %6 = tpu.matmul %4, %5, %cst {dimension_numbers = #tpu.dot_dimension_numbers<[1], [0], [0], [1], [0, 0, 1, 1], [], []>} : vector<32x128xf32>, vector<128x128xf32>, vector<32x128xf32> -> vector<32x128xf32>
    %7 = arith.addf %3, %6 : vector<32x128xf32>
    %c0_6 = arith.constant 0 : index
    %c0_7 = arith.constant 0 : index
    %8 = vector.load %arg6[%c0_6, %c0_7] : memref<32x128xf32, #tpu.memory_space<vmem>>, vector<32x128xf32>
    tpu.vector_store %arg6[%c0_6, %c0_7], %7 {strides = array<i32>} : memref<32x128xf32, #tpu.memory_space<vmem>>, vector<32x128xf32>,
    %c0_i32_8 = arith.constant 0 : i32
    %9 = arith.cmpi eq, %arg2, %c0_i32_8 : i32
    %10 = arith.extui %9 : i1 to i32
    %c0_i32_9 = arith.constant 0 : i32
    %11 = arith.cmpi ne, %10, %c0_i32_9 : i32
    scf.if %11 {
      %c0_10 = arith.constant 0 : index
      %c0_11 = arith.constant 0 : index
      %12 = vector.load %arg6[%c0_10, %c0_11] : memref<32x128xf32, #tpu.memory_space<vmem>>, vector<32x128xf32>
      %c0_12 = arith.constant 0 : index
      %c0_13 = arith.constant 0 : index
      %13 = vector.load %arg5[%c0_12, %c0_13] : memref<32x128xf32, #tpu.memory_space<vmem>>, vector<32x128xf32>
      tpu.vector_store %arg5[%c0_12, %c0_13], %12 {strides = array<i32>} : memref<32x128xf32, #tpu.memory_space<vmem>>, vector<32x128xf32>,
    } else {
    }
    return
  }
  func.func @transform_0(%arg0: i32, %arg1: i32, %arg2: i32) -> (i32, i32) {
    %c0_i32 = arith.constant 0 : i32
    return %arg0, %arg2 : i32, i32
  }
  func.func @transform_1(%arg0: i32, %arg1: i32, %arg2: i32) -> (i32, i32) {
    %c0_i32 = arith.constant 0 : i32
    return %arg2, %arg1 : i32, i32
  }
  func.func @transform_2(%arg0: i32, %arg1: i32, %arg2: i32) -> (i32, i32) {
    %c0_i32 = arith.constant 0 : i32
    return %arg0, %arg1 : i32, i32
  }
}

</mosaic_0001>

<llo_original>
// kernel: matmul.1
$region0: #{matmul.1}
  #allocation0 [shape = 'u32[]', space=smem, size = 0x4, offset = 0x4, fixed_abs, tag = 'smem constant byte address 0x4 - core index']
  #allocation1 [shape = 'u32[72,128]{1,0:T(1,128)}', space=vmem, size = 0x9000, scoped, tag = 'internal scratch']
  #allocation2 [shape = 'f32[32,128]{1,0:T(8,128)}', space=vmem, size = 0x4000, scoped, tag = 'scratch operand']
  %s0 = inlined_call_operand.vmem [shape: f32[32,128], index: 0, kind: input, shape index: {}]
  %s1 = inlined_call_operand.vmem [shape: f32[128,128], index: 1, kind: input, shape index: {}]
  %s2 = inlined_call_operand.hbm [shape: f32[32,128], index: 2, kind: output, shape index: {}]
  %s3 = sld [smem:[#allocation0]]
  $region26: #{matmul.1} parent=0
    _
  %s5 = ssub.s32 1, %s3
  %s6 = scalar_select 0, %s5, %s3
  $region1: #{matmul.1} parent=0
    #allocation3 [shape = 'u8[16384]{0}', space=vmem, size = 0x4000, scoped, tag = 'output window, operand 0, single buffered']
    #allocation4 [shape = 's32[1]{0}', space=sflag, size = 0x4, scoped, tag = 'scoped memory for matmul.1']
    %7 = vsyncpa [#allocation4], 0
    // Predicated region
    $region2: #{matmul.1} parent=1 // pred_check
      _
    $region3: #{matmul.1} parent=1 // pred_check_branch
      %9 = sbr.rel (0) target = $region5
    $region4: #{matmul.1} parent=1 // pred_region
      _
    $region5: #{matmul.1} parent=1 // pred_fallthru
      _
    // Predicated region
    $region6: #{matmul.1} parent=1 // pred_check
      _
    $region7: #{matmul.1} parent=1 // pred_check_branch
      %11 = sbr.rel (0) target = $region9
    $region8: #{matmul.1} parent=1 // pred_region
      _
    $region9: #{matmul.1} parent=1 // pred_fallthru
      _
    %p12 = scmp.eq.s32.totalorder 0, 0
    // Predicated region
    $region10: #{matmul.1} parent=1 // pred_check
      %p13 = pneg %p12
    $region11: #{matmul.1} parent=1 // pred_check_branch
      %15 = sbr.rel (%p13) target = $region13
    $region12: #{matmul.1} parent=1 // pred_region
      %16 = vst [vmem:[#allocation2] sm:$0xff] 0.0
      %17 = vst [vmem:[#allocation2 + $0x8] sm:$0xff] 0.0
      %18 = vst [vmem:[#allocation2 + $0x10] sm:$0xff] 0.0
      %19 = vst [vmem:[#allocation2 + $0x18] sm:$0xff] 0.0
    $region13: #{matmul.1} parent=1 // pred_fallthru
      _
    %v20 = vld [vmem:[#allocation2] sm:$0xff]
    %v21 = vld [vmem:[#allocation2 + $0x8] sm:$0xff]
    %v22 = vld [vmem:[#allocation2 + $0x10] sm:$0xff]
    %v23 = vld [vmem:[#allocation2 + $0x18] sm:$0xff]
    %v24 = vld [vmem:[%s0] sm:$0xff]
    %v25 = vld [vmem:[%s0 + $0x8] sm:$0xff]
    %v26 = vld [vmem:[%s0 + $0x10] sm:$0xff]
    %v27 = vld [vmem:[%s0 + $0x18] sm:$0xff]
    %v28 = vld [vmem:[%s1] sm:$0xff]
    %v29 = vld [vmem:[%s1 + $0x8] sm:$0xff]
    %v30 = vld [vmem:[%s1 + $0x10] sm:$0xff]
    %v31 = vld [vmem:[%s1 + $0x18] sm:$0xff]
    %v32 = vld [vmem:[%s1 + $0x20] sm:$0xff]
    %v33 = vld [vmem:[%s1 + $0x28] sm:$0xff]
    %v34 = vld [vmem:[%s1 + $0x30] sm:$0xff]
    %v35 = vld [vmem:[%s1 + $0x38] sm:$0xff]
    %v36 = vld [vmem:[%s1 + $0x40] sm:$0xff]
    %v37 = vld [vmem:[%s1 + $0x48] sm:$0xff]
    %v38 = vld [vmem:[%s1 + $0x50] sm:$0xff]
    %v39 = vld [vmem:[%s1 + $0x58] sm:$0xff]
    %v40 = vld [vmem:[%s1 + $0x60] sm:$0xff]
    %v41 = vld [vmem:[%s1 + $0x68] sm:$0xff]
    %v42 = vld [vmem:[%s1 + $0x70] sm:$0xff]
    %v43 = vld [vmem:[%s1 + $0x78] sm:$0xff]
    %44 = vmatpush.msra.mxu0 %v43
    %45 = vmatpush.msra.mxu0 %v42
    %46 = vmatpush.msra.mxu0 %v41
    %47 = vmatpush.msra.mxu0 %v40
    %48 = vmatpush.msra.mxu0 %v39
    %49 = vmatpush.msra.mxu0 %v38
    %50 = vmatpush.msra.mxu0 %v37
    %51 = vmatpush.msra.mxu0 %v36
    %52 = vmatpush.msra.mxu0 %v35
    %53 = vmatpush.msra.mxu0 %v34
    %54 = vmatpush.msra.mxu0 %v33
    %55 = vmatpush.msra.mxu0 %v32
    %56 = vmatpush.msra.mxu0 %v31
    %57 = vmatpush.msra.mxu0 %v30
    %58 = vmatpush.msra.mxu0 %v29
    %59 = vmatpush.msra.mxu0 %v28
    %60 = vmatmul.f32.gmra.mxu0 %v24
    %v61 = vpop.f32.mrf.mxu0
    %v62 = vadd.f32 0.0, %v61
    %63 = vmatmul.f32.gmra.mxu0 %v25
    %v64 = vpop.f32.mrf.mxu0
    %v65 = vadd.f32 0.0, %v64
    %66 = vmatmul.f32.gmra.mxu0 %v26
    %v67 = vpop.f32.mrf.mxu0
    %v68 = vadd.f32 0.0, %v67
    %69 = vmatmul.f32.gmra.mxu0 %v27
    %v70 = vpop.f32.mrf.mxu0
    %v71 = vadd.f32 0.0, %v70
    %72 = vdwg.mxu0
    %v73 = vadd.f32 %v20, %v62
    %v74 = vadd.f32 %v21, %v65
    %v75 = vadd.f32 %v22, %v68
    %v76 = vadd.f32 %v23, %v71
    %77 = vst [vmem:[#allocation2] sm:$0xff] %v73
    %78 = vst [vmem:[#allocation2 + $0x8] sm:$0xff] %v74
    %79 = vst [vmem:[#allocation2 + $0x10] sm:$0xff] %v75
    %80 = vst [vmem:[#allocation2 + $0x18] sm:$0xff] %v76
    // Predicated region
    $region14: #{matmul.1} parent=1 // pred_check
      %p81 = pneg %p12
    $region15: #{matmul.1} parent=1 // pred_check_branch
      %83 = sbr.rel (%p81) target = $region17
    $region16: #{matmul.1} parent=1 // pred_region
      %v84 = vld [vmem:[#allocation2] sm:$0xff]
      %v85 = vld [vmem:[#allocation2 + $0x8] sm:$0xff]
      %v86 = vld [vmem:[#allocation2 + $0x10] sm:$0xff]
      %v87 = vld [vmem:[#allocation2 + $0x18] sm:$0xff]
      %88 = vst [vmem:[#allocation3] sm:$0xff] %v84
      %89 = vst [vmem:[#allocation3 + $0x8] sm:$0xff] %v85
      %90 = vst [vmem:[#allocation3 + $0x10] sm:$0xff] %v86
      %91 = vst [vmem:[#allocation3 + $0x18] sm:$0xff] %v87
    $region17: #{matmul.1} parent=1 // pred_fallthru
      _
    // Predicated region
    $region18: #{matmul.1} parent=1 // pred_check
      _
    $region19: #{matmul.1} parent=1 // pred_check_branch
      %93 = sbr.rel (0) target = $region21
    $region20: #{matmul.1} parent=1 // pred_region
      %95 = vsyncadd [#allocation4], 0
      %s96 = sshll.u32 [#allocation3], 4
      %s97 = int_to_ptr.vmem [resolvable:$true] %s96
      %s98 = sshll.u32 %s2, 4
      %s99 = int_to_ptr.hbm [resolvable:$true] %s98
      %104 = dma.vmem_to_hbm [thread:$0]  %s97, 512, %s99, [#allocation4], 128, 128, 8
    $region21: #{matmul.1} parent=1 // pred_fallthru
      _
    // Predicated region
    $region22: #{matmul.1} parent=1 // pred_check
      _
    $region23: #{matmul.1} parent=1 // pred_check_branch
      %106 = sbr.rel (0) target = $region25
    $region24: #{matmul.1} parent=1 // pred_region
      %108 = dma.done [#allocation4], 512
    $region25: #{matmul.1} parent=1 // pred_fallthru
      _
    %109 = vsyncpa [#allocation4], 1

</llo_original>
